<compile_context>
chip_gen: v6e
topology: v6e:2x2x1
jax: 0.10.0
libtpu: 0.0.40
codegen_flags: <defaults>
</compile_context>

<pallas_src>
import math

import jax
import jax.numpy as jnp
from jax import lax
from jax.experimental import pallas as pl
from jax.experimental.pallas import tpu as pltpu

SUBLANE = 8


# --------------------------------------------------------------------------
# Kernels
# --------------------------------------------------------------------------
def _fused_kernel(x_ref, w_ref, b_ref, o_ref):
    # out = x @ W_fused + b_fused   (single MXU matmul, f32 accumulation)
    acc = jnp.dot(x_ref[...], w_ref[...], preferred_element_type=jnp.float32)
    o_ref[...] = (acc + b_ref[...]).astype(o_ref.dtype)


def _two_matmul_kernel(x_ref, w1t_ref, b1_ref, w2t_ref, b2_ref, o_ref):
    # h = x @ W1^T + b1 ; out = h @ W2^T + b2
    # The (tm, H) intermediate stays in VMEM/vregs; it is never written to HBM.
    h = jnp.dot(x_ref[...], w1t_ref[...], preferred_element_type=jnp.float32)
    h = h + b1_ref[...]
    acc = jnp.dot(h.astype(w2t_ref.dtype), w2t_ref[...],
                  preferred_element_type=jnp.float32)
    o_ref[...] = (acc + b2_ref[...]).astype(o_ref.dtype)


# --------------------------------------------------------------------------
# One-time parameter preparation (NOT in the per-call hot path).
#   Fuse the two linears only when it does not increase FLOPs/weight bytes
#   (F <= 2*H); otherwise keep them separate in x@W layout.
# --------------------------------------------------------------------------
def prepare_desampler_params(w1, b1, w2, b2, *, param_dtype=None):
    """w1:(H,F), b1:(H,), w2:(F,H), b2:(F,) -> dict of kernel-ready params."""
    H, F = w1.shape
    if param_dtype is None:
        param_dtype = w1.dtype          # pass jnp.bfloat16 here for v6e/v7x speed
    hi = lax.Precision.HIGHEST
    if F <= 2 * H:
        # out = x @ (w2 @ w1).T + (w2 @ b1 + b2)
        w = jnp.matmul(w2, w1, precision=hi).T                      # (F, F)
        b = (jnp.matmul(w2, b1, precision=hi) + b2).reshape(1, F)   # (1, F)
        return dict(mode="fused", feature_size=F, hidden_size=H,
                    w=w.astype(param_dtype), b=b.astype(jnp.float32))
    return dict(mode="unfused", feature_size=F, hidden_size=H,
                w1t=w1.T.astype(param_dtype), b1=b1.reshape(1, H).astype(jnp.float32),
                w2t=w2.T.astype(param_dtype), b2=b2.reshape(1, F).astype(jnp.float32))


# --------------------------------------------------------------------------
# BlockSpec helpers
# --------------------------------------------------------------------------
def _resident_spec(shape, single_buffered):
    """Spec for a grid-invariant (weight/bias) input kept resident in VMEM."""
    index_map = lambda i: (0,) * len(shape)
    if single_buffered:
        # Constant index_map => no benefit from double buffering; Buffered(1)
        # halves the weight's VMEM footprint.
        return pl.BlockSpec(shape, index_map, pipeline_mode=pl.Buffered(1))
    return pl.BlockSpec(shape, index_map)


def _run_pallas(x, params, tm, single_buffered):
    B, F = x.shape
    H = params["hidden_size"]
    itemsize = x.dtype.itemsize
    grid = (pl.cdiv(B, tm),)

    x_spec = pl.BlockSpec((tm, F), lambda i: (i, 0))
    out_spec = pl.BlockSpec((tm, F), lambda i: (i, 0))

    if params["mode"] == "fused":
        kernel = _fused_kernel
        operands = (x, params["w"], params["b"])
        flops = 2 * B * F * F
    else:
        kernel = _two_matmul_kernel
        operands = (x, params["w1t"], params["b1"], params["w2t"], params["b2"])
        flops = 4 * B * F * H

    weights = operands[1:]
    weight_bytes = sum(int(a.size) * a.dtype.itemsize for a in weights)
    in_specs = [x_spec] + [_resident_spec(a.shape, single_buffered) for a in weights]

    # VMEM budget: double-buffered x/out tiles + resident params + intermediate.
    nbuf = 1 if single_buffered else 2
    vmem_bytes = 2 * tm * F * itemsize            # x tiles (double buffered)
    vmem_bytes += 2 * tm * F * itemsize           # out tiles (double buffered)
    vmem_bytes += nbuf * weight_bytes             # resident weights/biases
    if params["mode"] == "unfused":
        vmem_bytes += tm * H * 4                  # f32 intermediate
    vmem_limit = int(min(max(vmem_bytes * 2, 16 << 20), 100 << 20))

    bytes_accessed = int(2 * B * F * itemsize + weight_bytes)

    return pl.pallas_call(
        kernel,
        out_shape=jax.ShapeDtypeStruct((B, F), x.dtype),
        grid=grid,
        in_specs=in_specs,
        out_specs=out_spec,
        compiler_params=pltpu.CompilerParams(
            dimension_semantics=("parallel",),
            vmem_limit_bytes=vmem_limit,
        ),
        cost_estimate=pl.CostEstimate(
            flops=flops, transcendentals=0, bytes_accessed=bytes_accessed),
    )(*operands)


# --------------------------------------------------------------------------
# Forward
# --------------------------------------------------------------------------
_SINGLE_BUFFER_OK = None   # cached: does this JAX build accept Buffered(1)?


def desampler_forward(x, params, *, block_rows=256):
    """Desampler forward: x:(B,F) -> (B,F).

    Batch is tiled with a fixed `block_rows` row tile (multiple of 8) and a
    cdiv grid; the last (possibly partial) block is masked by Pallas.
    """
    global _SINGLE_BUFFER_OK
    B = x.shape[0]
    if B >= block_rows:
        tm = max(SUBLANE, (block_rows // SUBLANE) * SUBLANE)
    else:
        tm = B   # block == full array dim, always legal

    if _SINGLE_BUFFER_OK is None:
        try:
            out = _run_pallas(x, params, tm, single_buffered=True)
            _SINGLE_BUFFER_OK = True
            return out
        except Exception:
            # This JAX build rejected single-buffered resident inputs; fall
            # back to default double-buffered specs (proven path).
            _SINGLE_BUFFER_OK = False
    return _run_pallas(x, params, tm, single_buffered=_SINGLE_BUFFER_OK)


# --------------------------------------------------------------------------
# PyTorch-style nn.Linear init (uniform +- 1/sqrt(fan_in)) and f32 reference.
# --------------------------------------------------------------------------
def init_desampler_params(key, feature_size, hidden_size, dtype=jnp.float32):
    k1, k2, k3, k4 = jax.random.split(key, 4)
    bound1 = 1.0 / math.sqrt(feature_size)
    bound2 = 1.0 / math.sqrt(hidden_size)
    w1 = jax.random.uniform(k1, (hidden_size, feature_size), dtype, -bound1, bound1)
    b1 = jax.random.uniform(k2, (hidden_size,), dtype, -bound1, bound1)
    w2 = jax.random.uniform(k3, (feature_size, hidden_size), dtype, -bound2, bound2)
    b2 = jax.random.uniform(k4, (feature_size,), dtype, -bound2, bound2)
    return w1, b1, w2, b2


def _reference(x, w1, b1, w2, b2):
    hi = lax.Precision.HIGHEST
    h = jnp.matmul(x, w1.T, precision=hi) + b1
    return jnp.matmul(h, w2.T, precision=hi) + b2


if __name__ == "__main__":
    key = jax.random.PRNGKey(0)
    kx1, kp1, kx2, kp2 = jax.random.split(key, 4)

    # ---- Case 1: module demo shape (F <= 2H  ->  fused single-matmul path)
    batch, feature_size, hidden_size = 8, 32, 64
    x = jax.random.normal(kx1, (batch, feature_size), jnp.float32)
    w1, b1, w2, b2 = init_desampler_params(kp1, feature_size, hidden_size)
    params = prepare_desampler_params(w1, b1, w2, b2)
    out = jax.block_until_ready(desampler_forward(x, params))
    ref = _reference(x, w1, b1, w2, b2)
    assert out.shape == (batch, feature_size)
    assert jnp.allclose(out, ref, atol=1e-4, rtol=1e-4), float(jnp.max(jnp.abs(out - ref)))

    # ---- Case 2: low-rank shape (F > 2H -> unfused two-matmul path) with a
    #      ragged batch (B=20, tile=8) to exercise the masked last block.
    batch2, feature2, hidden2 = 20, 160, 32
    x2 = jax.random.normal(kx2, (batch2, feature2), jnp.float32)
    p2 = init_desampler_params(kp2, feature2, hidden2)
    params2 = prepare_desampler_params(*p2)
    out2 = jax.block_until_ready(desampler_forward(x2, params2, block_rows=8))
    ref2 = _reference(x2, *p2)
    assert out2.shape == (batch2, feature2)
    assert jnp.allclose(out2, ref2, atol=5e-4, rtol=5e-4), float(jnp.max(jnp.abs(out2 - ref2)))

    print("KERNEL_OK")
</pallas_src>

<mosaic_0001>
module attributes {stable_mosaic.version = 11 : i64} {
  func.func @_fused_kernel(%arg0: i32, %arg1: memref<8x32xf32, #tpu.memory_space<vmem>>, %arg2: memref<32x32xf32, #tpu.memory_space<vmem>>, %arg3: memref<1x32xf32, #tpu.memory_space<vmem>>, %arg4: memref<8x32xf32, #tpu.memory_space<vmem>>) attributes {dimension_semantics = [#tpu.dimension_semantics<parallel>], iteration_bounds = array<i64: 1>, scalar_prefetch = 0 : i64, scratch_operands = 0 : i64, tpu.core_type = #tpu.core_type<tc>, window_params = [{transform_indices = @transform_0, window_bounds = array<i64: 8, 32>}, {pipeline_mode = #tpu.pipeline_mode<synchronous>, transform_indices = @transform_1, window_bounds = array<i64: 32, 32>}, {pipeline_mode = #tpu.pipeline_mode<synchronous>, transform_indices = @transform_2, window_bounds = array<i64: 1, 32>}, {transform_indices = @transform_3, window_bounds = array<i64: 8, 32>}]} {
    %c0 = arith.constant 0 : index
    %c0_0 = arith.constant 0 : index
    %0 = vector.load %arg1[%c0, %c0_0] : memref<8x32xf32, #tpu.memory_space<vmem>>, vector<8x32xf32>
    %c0_1 = arith.constant 0 : index
    %c0_2 = arith.constant 0 : index
    %1 = vector.load %arg2[%c0_1, %c0_2] : memref<32x32xf32, #tpu.memory_space<vmem>>, vector<32x32xf32>
    %cst = arith.constant dense<0.000000e+00> : vector<8x32xf32>
    %2 = tpu.matmul %0, %1, %cst {dimension_numbers = #tpu.dot_dimension_numbers<[1], [0], [0], [1], [0, 0, 1, 1], [], []>} : vector<8x32xf32>, vector<32x32xf32>, vector<8x32xf32> -> vector<8x32xf32>
    %c0_3 = arith.constant 0 : index
    %c0_4 = arith.constant 0 : index
    %3 = vector.load %arg3[%c0_3, %c0_4] : memref<1x32xf32, #tpu.memory_space<vmem>>, vector<1x32xf32>
    %4 = vector.broadcast %3 : vector<1x32xf32> to vector<8x32xf32>
    %5 = arith.addf %2, %4 : vector<8x32xf32>
    %c0_5 = arith.constant 0 : index
    %c0_6 = arith.constant 0 : index
    %6 = vector.load %arg4[%c0_5, %c0_6] : memref<8x32xf32, #tpu.memory_space<vmem>>, vector<8x32xf32>
    tpu.vector_store %arg4[%c0_5, %c0_6], %5 {strides = array<i32>} : memref<8x32xf32, #tpu.memory_space<vmem>>, vector<8x32xf32>,
    return
  }
  func.func @transform_0(%arg0: i32) -> (i32, i32) {
    %c0_i32 = arith.constant 0 : i32
    %c0_i32_0 = arith.constant 0 : i32
    return %arg0, %c0_i32 : i32, i32
  }
  func.func @transform_1(%arg0: i32) -> (i32, i32) {
    %c0_i32 = arith.constant 0 : i32
    %c0_i32_0 = arith.constant 0 : i32
    %c0_i32_1 = arith.constant 0 : i32
    return %c0_i32, %c0_i32_0 : i32, i32
  }
  func.func @transform_2(%arg0: i32) -> (i32, i32) {
    %c0_i32 = arith.constant 0 : i32
    %c0_i32_0 = arith.constant 0 : i32
    %c0_i32_1 = arith.constant 0 : i32
    return %c0_i32, %c0_i32_0 : i32, i32
  }
  func.func @transform_3(%arg0: i32) -> (i32, i32) {
    %c0_i32 = arith.constant 0 : i32
    %c0_i32_0 = arith.constant 0 : i32
    return %arg0, %c0_i32 : i32, i32
  }
}

module attributes {stable_mosaic.version = 11 : i64} {
  func.func @_fused_kernel(%arg0: i32, %arg1: memref<8x32xf32, #tpu.memory_space<vmem>>, %arg2: memref<32x32xf32, #tpu.memory_space<vmem>>, %arg3: memref<1x32xf32, #tpu.memory_space<vmem>>, %arg4: memref<8x32xf32, #tpu.memory_space<vmem>>) attributes {dimension_semantics = [#tpu.dimension_semantics<parallel>], iteration_bounds = array<i64: 1>, scalar_prefetch = 0 : i64, scratch_operands = 0 : i64, tpu.core_type = #tpu.core_type<tc>, window_params = [{transform_indices = @transform_0, window_bounds = array<i64: 8, 32>}, {pipeline_mode = #tpu.pipeline_mode<synchronous>, transform_indices = @transform_1, window_bounds = array<i64: 32, 32>}, {pipeline_mode = #tpu.pipeline_mode<synchronous>, transform_indices = @transform_2, window_bounds = array<i64: 1, 32>}, {transform_indices = @transform_3, window_bounds = array<i64: 8, 32>}]} {
    %c0 = arith.constant 0 : index
    %c0_0 = arith.constant 0 : index
    %0 = vector.load %arg1[%c0, %c0_0] : memref<8x32xf32, #tpu.memory_space<vmem>>, vector<8x32xf32>
    %c0_1 = arith.constant 0 : index
    %c0_2 = arith.constant 0 : index
    %1 = vector.load %arg2[%c0_1, %c0_2] : memref<32x32xf32, #tpu.memory_space<vmem>>, vector<32x32xf32>
    %cst = arith.constant dense<0.000000e+00> : vector<8x32xf32>
    %2 = tpu.matmul %0, %1, %cst {dimension_numbers = #tpu.dot_dimension_numbers<[1], [0], [0], [1], [0, 0, 1, 1], [], []>} : vector<8x32xf32>, vector<32x32xf32>, vector<8x32xf32> -> vector<8x32xf32>
    %c0_3 = arith.constant 0 : index
    %c0_4 = arith.constant 0 : index
    %3 = vector.load %arg3[%c0_3, %c0_4] : memref<1x32xf32, #tpu.memory_space<vmem>>, vector<1x32xf32>
    %4 = vector.broadcast %3 : vector<1x32xf32> to vector<8x32xf32>
    %5 = arith.addf %2, %4 : vector<8x32xf32>
    %c0_5 = arith.constant 0 : index
    %c0_6 = arith.constant 0 : index
    %6 = vector.load %arg4[%c0_5, %c0_6] : memref<8x32xf32, #tpu.memory_space<vmem>>, vector<8x32xf32>
    tpu.vector_store %arg4[%c0_5, %c0_6], %5 {strides = array<i32>} : memref<8x32xf32, #tpu.memory_space<vmem>>, vector<8x32xf32>,
    return
  }
  func.func @transform_0(%arg0: i32) -> (i32, i32) {
    %c0_i32 = arith.constant 0 : i32
    %c0_i32_0 = arith.constant 0 : i32
    return %arg0, %c0_i32 : i32, i32
  }
  func.func @transform_1(%arg0: i32) -> (i32, i32) {
    %c0_i32 = arith.constant 0 : i32
    %c0_i32_0 = arith.constant 0 : i32
    %c0_i32_1 = arith.constant 0 : i32
    return %c0_i32, %c0_i32_0 : i32, i32
  }
  func.func @transform_2(%arg0: i32) -> (i32, i32) {
    %c0_i32 = arith.constant 0 : i32
    %c0_i32_0 = arith.constant 0 : i32
    %c0_i32_1 = arith.constant 0 : i32
    return %c0_i32, %c0_i32_0 : i32, i32
  }
  func.func @transform_3(%arg0: i32) -> (i32, i32) {
    %c0_i32 = arith.constant 0 : i32
    %c0_i32_0 = arith.constant 0 : i32
    return %arg0, %c0_i32 : i32, i32
  }
}

</mosaic_0001>

<llo_original>
// kernel: tpu_custom_call.1
$region0: #{tpu_custom_call.1}
  #allocation0 [shape = 'u32[]', space=smem, size = 0x4, offset = 0x4, fixed_abs, tag = 'smem constant byte address 0x4 - core index']
  #allocation1 [shape = 'u32[144,128]{1,0:T(1,128)}', space=vmem, size = 0x12000, scoped, tag = 'internal scratch']
  %s0 = inlined_call_operand.hbm [shape: f32[8,32], index: 0, kind: input, shape index: {}]
  %s1 = inlined_call_operand.hbm [shape: f32[32,32], index: 1, kind: input, shape index: {}]
  %s2 = inlined_call_operand.vmem [shape: f32[1,32], index: 2, kind: input, shape index: {}]
  %s3 = inlined_call_operand.hbm [shape: f32[8,32], index: 3, kind: output, shape index: {}]
  %s4 = sld [smem:[#allocation0]]
  $region30: #{tpu_custom_call.1} parent=0
    _
  %s6 = ssub.s32 1, %s4
  %s7 = scalar_select 0, %s6, %s4
  $region1: #{tpu_custom_call.1} parent=0
    #allocation2 [shape = 'u8[4096]{0}', space=vmem, size = 0x1000, scoped, tag = 'input window, operand 0, single buffered']
    #allocation3 [shape = 's32[1]{0}', space=sflag, size = 0x4, scoped, tag = 'scoped memory for tpu_custom_call.1']
    #allocation4 [shape = 's32[1]{0}', space=sflag, size = 0x4, scoped, tag = 'scoped memory for tpu_custom_call.1']
    #allocation5 [shape = 'u8[16384]{0}', space=vmem, size = 0x4000, scoped, tag = 'input window, operand 1, single buffered']
    #allocation6 [shape = 's32[1]{0}', space=sflag, size = 0x4, scoped, tag = 'scoped memory for tpu_custom_call.1']
    #allocation7 [shape = 'u8[4096]{0}', space=vmem, size = 0x1000, scoped, tag = 'output window, operand 0, single buffered']
    %8 = vsyncpa [#allocation3], 0
    %9 = vsyncpa [#allocation6], 0
    %10 = vsyncpa [#allocation4], 0
    // Predicated region
    $region2: #{tpu_custom_call.1} parent=1 // pred_check
      _
    $region3: #{tpu_custom_call.1} parent=1 // pred_check_branch
      %12 = sbr.rel (0) target = $region5
    $region4: #{tpu_custom_call.1} parent=1 // pred_region
      %s14 = ssub.s32 128, 128
      %15 = vsyncadd [#allocation3], %s14
      %s17 = sshll.u32 [#allocation2], 4
      %s18 = int_to_ptr.vmem [resolvable:$true] %s17
      %20 = dma.hbm_to_vmem [thread:$0]  %s0, 128, %s18, [#allocation3]
    $region5: #{tpu_custom_call.1} parent=1 // pred_fallthru
      _
    // Predicated region
    $region6: #{tpu_custom_call.1} parent=1 // pred_check
      _
    $region7: #{tpu_custom_call.1} parent=1 // pred_check_branch
      %22 = sbr.rel (0) target = $region9
    $region8: #{tpu_custom_call.1} parent=1 // pred_region
      %s24 = ssub.s32 512, 512
      %25 = vsyncadd [#allocation6], %s24
      %s26 = sshll.u32 [#allocation5], 4
      %s27 = int_to_ptr.vmem [resolvable:$true] %s26
      %32 = dma.hbm_to_vmem [thread:$0]  %s1, 512, %s27, [#allocation6], 128, 128, 8
    $region9: #{tpu_custom_call.1} parent=1 // pred_fallthru
      _
    // Predicated region
    $region10: #{tpu_custom_call.1} parent=1 // pred_check
      _
    $region11: #{tpu_custom_call.1} parent=1 // pred_check_branch
      %34 = sbr.rel (0) target = $region13
    $region12: #{tpu_custom_call.1} parent=1 // pred_region
      _
    $region13: #{tpu_custom_call.1} parent=1 // pred_fallthru
      _
    // Predicated region
    $region14: #{tpu_custom_call.1} parent=1 // pred_check
      _
    $region15: #{tpu_custom_call.1} parent=1 // pred_check_branch
      %36 = sbr.rel (0) target = $region17
    $region16: #{tpu_custom_call.1} parent=1 // pred_region
      %37 = dma.done [#allocation3], 128
    $region17: #{tpu_custom_call.1} parent=1 // pred_fallthru
      _
    // Predicated region
    $region18: #{tpu_custom_call.1} parent=1 // pred_check
      _
    $region19: #{tpu_custom_call.1} parent=1 // pred_check_branch
      %39 = sbr.rel (0) target = $region21
    $region20: #{tpu_custom_call.1} parent=1 // pred_region
      %40 = dma.done [#allocation6], 512
    $region21: #{tpu_custom_call.1} parent=1 // pred_fallthru
      _
    %v41 = vld [vmem:[#allocation2] sm:$0xff]
    %v42 = vld [vmem:[#allocation5] sm:$0xff]
    %v43 = vld [vmem:[#allocation5 + $0x8] sm:$0xff]
    %v44 = vld [vmem:[#allocation5 + $0x10] sm:$0xff]
    %v45 = vld [vmem:[#allocation5 + $0x18] sm:$0xff]
    %v46 = vld [vmem:[%s2] sm:$0x1]
    %v48 = vlaneseq
    %v49 = vshrl.u32 %v48, 7
    %v50 = vsub.s32 0, %v49
    %v51 = vrot.slane %v46, %v50
    %vm53 = vcmask 261120
    %v55 = vsel %vm53, %v41, 0
    %57 = vmatprep.subr.mxu0 0.0
    %58 = vmatpush1.msra.mxu0 0.0
    %59 = vmatprep.subr.mxu0 0.0
    %60 = vmatpush1.msra.mxu0 0.0
    %61 = vmatprep.subr.mxu0 0.0
    %62 = vmatpush1.msra.mxu0 0.0
    %63 = vmatprep.subr.mxu0 0.0
    %64 = vmatpush1.msra.mxu0 0.0
    %65 = vmatprep.subr.mxu0 0.0
    %66 = vmatpush1.msra.mxu0 0.0
    %67 = vmatprep.subr.mxu0 0.0
    %68 = vmatpush1.msra.mxu0 0.0
    %69 = vmatprep.subr.mxu0 0.0
    %70 = vmatpush1.msra.mxu0 0.0
    %71 = vmatprep.subr.mxu0 0.0
    %72 = vmatpush1.msra.mxu0 0.0
    %73 = vmatprep.subr.mxu0 0.0
    %74 = vmatpush1.msra.mxu0 0.0
    %75 = vmatprep.subr.mxu0 0.0
    %76 = vmatpush1.msra.mxu0 0.0
    %77 = vmatprep.subr.mxu0 0.0
    %78 = vmatpush1.msra.mxu0 0.0
    %79 = vmatprep.subr.mxu0 0.0
    %80 = vmatpush1.msra.mxu0 0.0
    %81 = vmatprep.subr.mxu0 0.0
    %82 = vmatpush1.msra.mxu0 %v45
    %83 = vmatprep.subr.mxu0 0.0
    %84 = vmatpush1.msra.mxu0 %v44
    %85 = vmatprep.subr.mxu0 0.0
    %86 = vmatpush1.msra.mxu0 %v43
    %87 = vmatprep.subr.mxu0 0.0
    %88 = vmatpush1.msra.mxu0 %v42
    %89 = vmatprep.subr.mxu0 0.0
    %90 = vmatpush2.msra.mxu0 0.0
    %91 = vmatprep.subr.mxu0 0.0
    %92 = vmatpush2.msra.mxu0 0.0
    %93 = vmatprep.subr.mxu0 0.0
    %94 = vmatpush2.msra.mxu0 0.0
    %95 = vmatprep.subr.mxu0 0.0
    %96 = vmatpush2.msra.mxu0 0.0
    %97 = vmatprep.subr.mxu0 0.0
    %98 = vmatpush2.msra.mxu0 0.0
    %99 = vmatprep.subr.mxu0 0.0
    %100 = vmatpush2.msra.mxu0 0.0
    %101 = vmatprep.subr.mxu0 0.0
    %102 = vmatpush2.msra.mxu0 0.0
    %103 = vmatprep.subr.mxu0 0.0
    %104 = vmatpush2.msra.mxu0 0.0
    %105 = vmatprep.subr.mxu0 0.0
    %106 = vmatpush2.msra.mxu0 0.0
    %107 = vmatprep.subr.mxu0 0.0
    %108 = vmatpush2.msra.mxu0 0.0
    %109 = vmatprep.subr.mxu0 0.0
    %110 = vmatpush2.msra.mxu0 0.0
    %111 = vmatprep.subr.mxu0 0.0
    %112 = vmatpush2.msra.mxu0 0.0
    %113 = vmatprep.subr.mxu0 0.0
    %114 = vmatpush2.msra.mxu0 0.0
    %115 = vmatprep.subr.mxu0 0.0
    %116 = vmatpush2.msra.mxu0 0.0
    %117 = vmatprep.subr.mxu0 0.0
    %118 = vmatpush2.msra.mxu0 0.0
    %119 = vmatprep.subr.mxu0 0.0
    %120 = vmatpush2.msra.mxu0 0.0
    %121 = vmatprep.mubr.f32.mxu0 0.0
    %122 = vmatmul.mubr.f32.gmra.mxu0 %v55
    %v123 = vpop.f32.mrf.mxu0
    %v124 = vadd.f32 %v51, %v123
    %v125 = vpop.f32.mrf.mxu0
    %126 = vdwg.mxu0
    %127 = vst.msk [vmem:[#allocation7] sm:$0xff] %vm53, %v124
    // Predicated region
    $region22: #{tpu_custom_call.1} parent=1 // pred_check
      _
    $region23: #{tpu_custom_call.1} parent=1 // pred_check_branch
      %129 = sbr.rel (0) target = $region25
    $region24: #{tpu_custom_call.1} parent=1 // pred_region
      %s131 = ssub.s32 128, 128
      %132 = vsyncadd [#allocation4], %s131
      %s134 = sshll.u32 [#allocation7], 4
      %s135 = int_to_ptr.vmem [resolvable:$true] %s134
      %137 = dma.vmem_to_hbm [thread:$0]  %s135, 128, %s3, [#allocation4]
    $region25: #{tpu_custom_call.1} parent=1 // pred_fallthru
      _
    // Predicated region
    $region26: #{tpu_custom_call.1} parent=1 // pred_check
      _
    $region27: #{tpu_custom_call.1} parent=1 // pred_check_branch
      %139 = sbr.rel (0) target = $region29
    $region28: #{tpu_custom_call.1} parent=1 // pred_region
      %140 = dma.done [#allocation4], 128
    $region29: #{tpu_custom_call.1} parent=1 // pred_fallthru
      _
    %141 = vsyncpa [#allocation3], 1
    %142 = vsyncpa [#allocation6], 1
    %143 = vsyncpa [#allocation4], 1

// kernel: tpu_custom_call.1
$region0: #{tpu_custom_call.1}
  #allocation0 [shape = 'u32[]', space=smem, size = 0x4, offset = 0x4, fixed_abs, tag = 'smem constant byte address 0x4 - core index']
  #allocation1 [shape = 'u32[144,128]{1,0:T(1,128)}', space=vmem, size = 0x12000, scoped, tag = 'internal scratch']
  %s0 = inlined_call_operand.hbm [shape: f32[8,32], index: 0, kind: input, shape index: {}]
  %s1 = inlined_call_operand.hbm [shape: f32[32,32], index: 1, kind: input, shape index: {}]
  %s2 = inlined_call_operand.vmem [shape: f32[1,32], index: 2, kind: input, shape index: {}]
  %s3 = inlined_call_operand.hbm [shape: f32[8,32], index: 3, kind: output, shape index: {}]
  %s4 = sld [smem:[#allocation0]]
  $region30: #{tpu_custom_call.1} parent=0
    _
  %s6 = ssub.s32 1, %s4
  %s7 = scalar_select 0, %s6, %s4
  $region1: #{tpu_custom_call.1} parent=0
    #allocation2 [shape = 'u8[4096]{0}', space=vmem, size = 0x1000, scoped, tag = 'input window, operand 0, single buffered']
    #allocation3 [shape = 's32[1]{0}', space=sflag, size = 0x4, scoped, tag = 'scoped memory for tpu_custom_call.1']
    #allocation4 [shape = 's32[1]{0}', space=sflag, size = 0x4, scoped, tag = 'scoped memory for tpu_custom_call.1']
    #allocation5 [shape = 'u8[16384]{0}', space=vmem, size = 0x4000, scoped, tag = 'input window, operand 1, single buffered']
    #allocation6 [shape = 's32[1]{0}', space=sflag, size = 0x4, scoped, tag = 'scoped memory for tpu_custom_call.1']
    #allocation7 [shape = 'u8[4096]{0}', space=vmem, size = 0x1000, scoped, tag = 'output window, operand 0, single buffered']
    %8 = vsyncpa [#allocation3], 0
    %9 = vsyncpa [#allocation6], 0
    %10 = vsyncpa [#allocation4], 0
    // Predicated region
    $region2: #{tpu_custom_call.1} parent=1 // pred_check
      _
    $region3: #{tpu_custom_call.1} parent=1 // pred_check_branch
      %12 = sbr.rel (0) target = $region5
    $region4: #{tpu_custom_call.1} parent=1 // pred_region
      %s14 = ssub.s32 128, 128
      %15 = vsyncadd [#allocation3], %s14
      %s17 = sshll.u32 [#allocation2], 4
      %s18 = int_to_ptr.vmem [resolvable:$true] %s17
      %20 = dma.hbm_to_vmem [thread:$0]  %s0, 128, %s18, [#allocation3]
    $region5: #{tpu_custom_call.1} parent=1 // pred_fallthru
      _
    // Predicated region
    $region6: #{tpu_custom_call.1} parent=1 // pred_check
      _
    $region7: #{tpu_custom_call.1} parent=1 // pred_check_branch
      %22 = sbr.rel (0) target = $region9
    $region8: #{tpu_custom_call.1} parent=1 // pred_region
      %s24 = ssub.s32 512, 512
      %25 = vsyncadd [#allocation6], %s24
      %s26 = sshll.u32 [#allocation5], 4
      %s27 = int_to_ptr.vmem [resolvable:$true] %s26
      %32 = dma.hbm_to_vmem [thread:$0]  %s1, 512, %s27, [#allocation6], 128, 128, 8
    $region9: #{tpu_custom_call.1} parent=1 // pred_fallthru
      _
    // Predicated region
    $region10: #{tpu_custom_call.1} parent=1 // pred_check
      _
    $region11: #{tpu_custom_call.1} parent=1 // pred_check_branch
      %34 = sbr.rel (0) target = $region13
    $region12: #{tpu_custom_call.1} parent=1 // pred_region
      _
    $region13: #{tpu_custom_call.1} parent=1 // pred_fallthru
      _
    // Predicated region
    $region14: #{tpu_custom_call.1} parent=1 // pred_check
      _
    $region15: #{tpu_custom_call.1} parent=1 // pred_check_branch
      %36 = sbr.rel (0) target = $region17
    $region16: #{tpu_custom_call.1} parent=1 // pred_region
      %37 = dma.done [#allocation3], 128
    $region17: #{tpu_custom_call.1} parent=1 // pred_fallthru
      _
    // Predicated region
    $region18: #{tpu_custom_call.1} parent=1 // pred_check
      _
    $region19: #{tpu_custom_call.1} parent=1 // pred_check_branch
      %39 = sbr.rel (0) target = $region21
    $region20: #{tpu_custom_call.1} parent=1 // pred_region
      %40 = dma.done [#allocation6], 512
    $region21: #{tpu_custom_call.1} parent=1 // pred_fallthru
      _
    %v41 = vld [vmem:[#allocation2] sm:$0xff]
    %v42 = vld [vmem:[#allocation5] sm:$0xff]
    %v43 = vld [vmem:[#allocation5 + $0x8] sm:$0xff]
    %v44 = vld [vmem:[#allocation5 + $0x10] sm:$0xff]
    %v45 = vld [vmem:[#allocation5 + $0x18] sm:$0xff]
    %v46 = vld [vmem:[%s2] sm:$0x1]
    %v48 = vlaneseq
    %v49 = vshrl.u32 %v48, 7
    %v50 = vsub.s32 0, %v49
    %v51 = vrot.slane %v46, %v50
    %vm53 = vcmask 261120
    %v55 = vsel %vm53, %v41, 0
    %57 = vmatprep.subr.mxu0 0.0
    %58 = vmatpush1.msra.mxu0 0.0
    %59 = vmatprep.subr.mxu0 0.0
    %60 = vmatpush1.msra.mxu0 0.0
    %61 = vmatprep.subr.mxu0 0.0
    %62 = vmatpush1.msra.mxu0 0.0
    %63 = vmatprep.subr.mxu0 0.0
    %64 = vmatpush1.msra.mxu0 0.0
    %65 = vmatprep.subr.mxu0 0.0
    %66 = vmatpush1.msra.mxu0 0.0
    %67 = vmatprep.subr.mxu0 0.0
    %68 = vmatpush1.msra.mxu0 0.0
    %69 = vmatprep.subr.mxu0 0.0
    %70 = vmatpush1.msra.mxu0 0.0
    %71 = vmatprep.subr.mxu0 0.0
    %72 = vmatpush1.msra.mxu0 0.0
    %73 = vmatprep.subr.mxu0 0.0
    %74 = vmatpush1.msra.mxu0 0.0
    %75 = vmatprep.subr.mxu0 0.0
    %76 = vmatpush1.msra.mxu0 0.0
    %77 = vmatprep.subr.mxu0 0.0
    %78 = vmatpush1.msra.mxu0 0.0
    %79 = vmatprep.subr.mxu0 0.0
    %80 = vmatpush1.msra.mxu0 0.0
    %81 = vmatprep.subr.mxu0 0.0
    %82 = vmatpush1.msra.mxu0 %v45
    %83 = vmatprep.subr.mxu0 0.0
    %84 = vmatpush1.msra.mxu0 %v44
    %85 = vmatprep.subr.mxu0 0.0
    %86 = vmatpush1.msra.mxu0 %v43
    %87 = vmatprep.subr.mxu0 0.0
    %88 = vmatpush1.msra.mxu0 %v42
    %89 = vmatprep.subr.mxu0 0.0
    %90 = vmatpush2.msra.mxu0 0.0
    %91 = vmatprep.subr.mxu0 0.0
    %92 = vmatpush2.msra.mxu0 0.0
    %93 = vmatprep.subr.mxu0 0.0
    %94 = vmatpush2.msra.mxu0 0.0
    %95 = vmatprep.subr.mxu0 0.0
    %96 = vmatpush2.msra.mxu0 0.0
    %97 = vmatprep.subr.mxu0 0.0
    %98 = vmatpush2.msra.mxu0 0.0
    %99 = vmatprep.subr.mxu0 0.0
    %100 = vmatpush2.msra.mxu0 0.0
    %101 = vmatprep.subr.mxu0 0.0
    %102 = vmatpush2.msra.mxu0 0.0
    %103 = vmatprep.subr.mxu0 0.0
    %104 = vmatpush2.msra.mxu0 0.0
    %105 = vmatprep.subr.mxu0 0.0
    %106 = vmatpush2.msra.mxu0 0.0
    %107 = vmatprep.subr.mxu0 0.0
    %108 = vmatpush2.msra.mxu0 0.0
    %109 = vmatprep.subr.mxu0 0.0
    %110 = vmatpush2.msra.mxu0 0.0
    %111 = vmatprep.subr.mxu0 0.0
    %112 = vmatpush2.msra.mxu0 0.0
    %113 = vmatprep.subr.mxu0 0.0
    %114 = vmatpush2.msra.mxu0 0.0
    %115 = vmatprep.subr.mxu0 0.0
    %116 = vmatpush2.msra.mxu0 0.0
    %117 = vmatprep.subr.mxu0 0.0
    %118 = vmatpush2.msra.mxu0 0.0
    %119 = vmatprep.subr.mxu0 0.0
    %120 = vmatpush2.msra.mxu0 0.0
    %121 = vmatprep.mubr.f32.mxu0 0.0
    %122 = vmatmul.mubr.f32.gmra.mxu0 %v55
    %v123 = vpop.f32.mrf.mxu0
    %v124 = vadd.f32 %v51, %v123
    %v125 = vpop.f32.mrf.mxu0
    %126 = vdwg.mxu0
    %127 = vst.msk [vmem:[#allocation7] sm:$0xff] %vm53, %v124
    // Predicated region
    $region22: #{tpu_custom_call.1} parent=1 // pred_check
      _
    $region23: #{tpu_custom_call.1} parent=1 // pred_check_branch
      %129 = sbr.rel (0) target = $region25
    $region24: #{tpu_custom_call.1} parent=1 // pred_region
      %s131 = ssub.s32 128, 128
      %132 = vsyncadd [#allocation4], %s131
      %s134 = sshll.u32 [#allocation7], 4
      %s135 = int_to_ptr.vmem [resolvable:$true] %s134
      %137 = dma.vmem_to_hbm [thread:$0]  %s135, 128, %s3, [#allocation4]
    $region25: #{tpu_custom_call.1} parent=1 // pred_fallthru
      _
    // Predicated region
    $region26: #{tpu_custom_call.1} parent=1 // pred_check
      _
    $region27: #{tpu_custom_call.1} parent=1 // pred_check_branch
      %139 = sbr.rel (0) target = $region29
    $region28: #{tpu_custom_call.1} parent=1 // pred_region
      %140 = dma.done [#allocation4], 128
    $region29: #{tpu_custom_call.1} parent=1 // pred_fallthru
      _
    %141 = vsyncpa [#allocation3], 1
    %142 = vsyncpa [#allocation6], 1
    %143 = vsyncpa [#allocation4], 1

</llo_original>
